<compile_context>
chip_gen: v6e
topology: v6e:2x2x1
jax: 0.10.0
libtpu: 0.0.40
codegen_flags: <defaults>
</compile_context>

<pallas_src>
import math

import jax
import jax.numpy as jnp
from jax.experimental import pallas as pl
from jax.experimental.pallas import tpu as pltpu

IN_F = 7      # Linear(7, 5) input features
HID_F = 5     # hidden features
OUT_F = 1     # outputn (default 1) -- kernel is specialized to outputn == 1
N_PARAMS = IN_F + OUT_F   # 7 collapsed weights + 1 collapsed bias


def _round_up(a, m):
    return ((a + m - 1) // m) * m


def predictor_kernel(p_ref, x_ref, out_ref):
    """p_ref: SMEM (8,) f32 = [w_eff[0..6], b_eff];  x_ref: (7, TB);  out: (1, TB)."""
    x = x_ref[...]                                   # (7, TB), batch on lanes

    # 7 scalar-broadcast FMAs on the VPU (no MXU for a K=7 contraction).
    acc = x[0:1, :] * p_ref[0]                       # (1, TB)
    for k in range(1, IN_F):
        acc = acc + x[k:k + 1, :] * p_ref[k]

    out_ref[...] = jax.nn.sigmoid(acc + p_ref[IN_F])  # (1, TB), full-width store


def pack_params(w1, b1, w2, b2):
    """Collapse Linear(7,5) o Linear(5,1) into one 7->1 affine map.

    w1: (7,5) (stored as (in,out)), b1: (1,5), w2: (5,1), b2: (1,1).
    Returns a flat (8,) f32 vector [w_eff(7), b_eff(1)] destined for SMEM.
    """
    w_eff = w1 @ w2                                  # (7, 1)
    b_eff = b1 @ w2 + b2                             # (1, 1)
    return jnp.concatenate(
        [w_eff.reshape(-1), b_eff.reshape(-1)]).astype(jnp.float32)  # (8,)


def predictor_forward(x, params, *, block_b=2048):
    """x: (B, 7) f32, params: (8,) f32 -> (B, 1) f32."""
    B, F = x.shape
    assert F == IN_F
    assert params.shape == (N_PARAMS,)

    # Lane-dense tile width: multiple of 128, no larger than the (padded) batch.
    block_b = max(128, (block_b // 128) * 128)
    block_b = min(block_b, _round_up(B, 128))
    b_pad = _round_up(B, block_b)

    # Batch on the lane axis; zero-pad so every tile/store is full-width.
    # (Padded tail columns produce sigmoid(b_eff) and are sliced off below.)
    x_t = jnp.transpose(x)                           # (7, B)
    if b_pad != B:
        x_t = jnp.pad(x_t, ((0, 0), (0, b_pad - B)))

    grid = (b_pad // block_b,)

    out_t = pl.pallas_call(
        predictor_kernel,
        out_shape=jax.ShapeDtypeStruct((OUT_F, b_pad), jnp.float32),
        grid=grid,
        in_specs=[
            # 8 scalar parameters, resident in SMEM for the whole call.
            pl.BlockSpec(memory_space=pltpu.MemorySpace.SMEM),
            # lane-dense input tile: features on sublanes, batch on lanes.
            pl.BlockSpec((IN_F, block_b), lambda i: (0, i)),
        ],
        out_specs=pl.BlockSpec((OUT_F, block_b), lambda i: (0, i)),
        compiler_params=pltpu.CompilerParams(
            dimension_semantics=("parallel",)),
        cost_estimate=pl.CostEstimate(
            flops=16 * b_pad,
            transcendentals=b_pad,
            bytes_accessed=(IN_F + OUT_F) * 4 * b_pad),
    )(params, x_t)

    return jnp.transpose(out_t[:, :B])               # (B, 1)


def predictor_reference(x, w1, b1, w2, b2):
    """Pure-JAX reference matching the PyTorch module exactly (no collapsing)."""
    h = x @ w1 + b1
    y = h @ w2 + b2
    return jax.nn.sigmoid(y)


if __name__ == "__main__":
    key = jax.random.PRNGKey(0)
    k_x, k_w1, k_b1, k_w2, k_b2 = jax.random.split(key, 5)

    B = 512            # small batch; with block_b=128 this gives a 4-step grid

    def u(k, shape, bound):
        return jax.random.uniform(k, shape, jnp.float32, -bound, bound)

    # PyTorch-style nn.Linear init bounds (U[-1/sqrt(fan_in), 1/sqrt(fan_in)]).
    b_fc1 = 1.0 / math.sqrt(IN_F)
    b_fc2 = 1.0 / math.sqrt(HID_F)
    w1 = u(k_w1, (IN_F, HID_F), b_fc1)   # stored pre-transposed: (in, out)
    b1 = u(k_b1, (1, HID_F), b_fc1)
    w2 = u(k_w2, (HID_F, OUT_F), b_fc2)  # stored pre-transposed: (in, out)
    b2 = u(k_b2, (1, OUT_F), b_fc2)

    x = jax.random.normal(k_x, (B, IN_F), jnp.float32)

    params = pack_params(w1, b1, w2, b2)

    out = predictor_forward(x, params, block_b=128)
    out = jax.block_until_ready(out)
    assert out.shape == (B, OUT_F)

    ref = predictor_reference(x, w1, b1, w2, b2)
    max_err = float(jnp.max(jnp.abs(out - ref)))
    assert jnp.allclose(out, ref, atol=1e-5, rtol=1e-5), f"max_err={max_err}"

    print("KERNEL_OK")
</pallas_src>

<mosaic_0001>
module attributes {stable_mosaic.version = 11 : i64} {
  func.func @predictor_kernel(%arg0: i32, %arg1: memref<8xf32, #tpu.memory_space<smem>>, %arg2: memref<7x128xf32, #tpu.memory_space<vmem>>, %arg3: memref<1x128xf32, #tpu.memory_space<vmem>>) attributes {dimension_semantics = [#tpu.dimension_semantics<parallel>], iteration_bounds = array<i64: 4>, scalar_prefetch = 0 : i64, scratch_operands = 0 : i64, tpu.core_type = #tpu.core_type<tc>, window_params = [{transform_indices = @transform_0, window_bounds = array<i64: 8>}, {transform_indices = @transform_1, window_bounds = array<i64: 7, 128>}, {transform_indices = @transform_2, window_bounds = array<i64: 1, 128>}]} {
    %c0 = arith.constant 0 : index
    %c0_0 = arith.constant 0 : index
    %0 = vector.load %arg2[%c0, %c0_0] : memref<7x128xf32, #tpu.memory_space<vmem>>, vector<7x128xf32>
    %1 = vector.extract_strided_slice %0 {offsets = [0, 0], sizes = [1, 128], strides = [1, 1]} : vector<7x128xf32> to vector<1x128xf32>
    %c0_1 = arith.constant 0 : index
    %2 = memref.load %arg1[%c0_1] : memref<8xf32, #tpu.memory_space<smem>>
    %3 = vector.broadcast %2 : f32 to vector<1x128xf32>
    %4 = arith.mulf %1, %3 : vector<1x128xf32>
    %5 = vector.extract_strided_slice %0 {offsets = [1, 0], sizes = [1, 128], strides = [1, 1]} : vector<7x128xf32> to vector<1x128xf32>
    %c1 = arith.constant 1 : index
    %6 = memref.load %arg1[%c1] : memref<8xf32, #tpu.memory_space<smem>>
    %7 = vector.broadcast %6 : f32 to vector<1x128xf32>
    %8 = arith.mulf %5, %7 : vector<1x128xf32>
    %9 = arith.addf %4, %8 : vector<1x128xf32>
    %10 = vector.extract_strided_slice %0 {offsets = [2, 0], sizes = [1, 128], strides = [1, 1]} : vector<7x128xf32> to vector<1x128xf32>
    %c2 = arith.constant 2 : index
    %11 = memref.load %arg1[%c2] : memref<8xf32, #tpu.memory_space<smem>>
    %12 = vector.broadcast %11 : f32 to vector<1x128xf32>
    %13 = arith.mulf %10, %12 : vector<1x128xf32>
    %14 = arith.addf %9, %13 : vector<1x128xf32>
    %15 = vector.extract_strided_slice %0 {offsets = [3, 0], sizes = [1, 128], strides = [1, 1]} : vector<7x128xf32> to vector<1x128xf32>
    %c3 = arith.constant 3 : index
    %16 = memref.load %arg1[%c3] : memref<8xf32, #tpu.memory_space<smem>>
    %17 = vector.broadcast %16 : f32 to vector<1x128xf32>
    %18 = arith.mulf %15, %17 : vector<1x128xf32>
    %19 = arith.addf %14, %18 : vector<1x128xf32>
    %20 = vector.extract_strided_slice %0 {offsets = [4, 0], sizes = [1, 128], strides = [1, 1]} : vector<7x128xf32> to vector<1x128xf32>
    %c4 = arith.constant 4 : index
    %21 = memref.load %arg1[%c4] : memref<8xf32, #tpu.memory_space<smem>>
    %22 = vector.broadcast %21 : f32 to vector<1x128xf32>
    %23 = arith.mulf %20, %22 : vector<1x128xf32>
    %24 = arith.addf %19, %23 : vector<1x128xf32>
    %25 = vector.extract_strided_slice %0 {offsets = [5, 0], sizes = [1, 128], strides = [1, 1]} : vector<7x128xf32> to vector<1x128xf32>
    %c5 = arith.constant 5 : index
    %26 = memref.load %arg1[%c5] : memref<8xf32, #tpu.memory_space<smem>>
    %27 = vector.broadcast %26 : f32 to vector<1x128xf32>
    %28 = arith.mulf %25, %27 : vector<1x128xf32>
    %29 = arith.addf %24, %28 : vector<1x128xf32>
    %30 = vector.extract_strided_slice %0 {offsets = [6, 0], sizes = [1, 128], strides = [1, 1]} : vector<7x128xf32> to vector<1x128xf32>
    %c6 = arith.constant 6 : index
    %31 = memref.load %arg1[%c6] : memref<8xf32, #tpu.memory_space<smem>>
    %32 = vector.broadcast %31 : f32 to vector<1x128xf32>
    %33 = arith.mulf %30, %32 : vector<1x128xf32>
    %34 = arith.addf %29, %33 : vector<1x128xf32>
    %c7 = arith.constant 7 : index
    %35 = memref.load %arg1[%c7] : memref<8xf32, #tpu.memory_space<smem>>
    %36 = vector.broadcast %35 : f32 to vector<1x128xf32>
    %37 = arith.addf %34, %36 : vector<1x128xf32>
    %38 = arith.negf %37 : vector<1x128xf32>
    %39 = math.exp %38 : vector<1x128xf32>
    %cst = arith.constant 1.000000e+00 : f32
    %40 = vector.broadcast %cst : f32 to vector<1x128xf32>
    %41 = arith.addf %40, %39 : vector<1x128xf32>
    %42 = arith.divf %40, %41 : vector<1x128xf32>
    %c0_2 = arith.constant 0 : index
    %c0_3 = arith.constant 0 : index
    %43 = vector.load %arg3[%c0_2, %c0_3] : memref<1x128xf32, #tpu.memory_space<vmem>>, vector<1x128xf32>
    tpu.vector_store %arg3[%c0_2, %c0_3], %42 {strides = array<i32>} : memref<1x128xf32, #tpu.memory_space<vmem>>, vector<1x128xf32>,
    return
  }
  func.func @transform_0(%arg0: i32) -> i32 {
    %c0_i32 = arith.constant 0 : i32
    %c0_i32_0 = arith.constant 0 : i32
    return %c0_i32 : i32
  }
  func.func @transform_1(%arg0: i32) -> (i32, i32) {
    %c0_i32 = arith.constant 0 : i32
    %c0_i32_0 = arith.constant 0 : i32
    return %c0_i32, %arg0 : i32, i32
  }
  func.func @transform_2(%arg0: i32) -> (i32, i32) {
    %c0_i32 = arith.constant 0 : i32
    %c0_i32_0 = arith.constant 0 : i32
    return %c0_i32, %arg0 : i32, i32
  }
}

</mosaic_0001>

<llo_original>
// kernel: tpu_custom_call.1
$region0: #{tpu_custom_call.1}
  #allocation0 [shape = 'u32[]', space=smem, size = 0x4, offset = 0x4, fixed_abs, tag = 'smem constant byte address 0x4 - core index']
  #allocation1 [shape = 'u32[144,128]{1,0:T(1,128)}', space=vmem, size = 0x12000, scoped, tag = 'internal scratch']
  %s0 = inlined_call_operand.hbm [shape: f32[8], index: 0, kind: input, shape index: {}]
  %s1 = inlined_call_operand.hbm [shape: f32[7,512], index: 1, kind: input, shape index: {}]
  %s2 = inlined_call_operand.hbm [shape: f32[1,512], index: 2, kind: output, shape index: {}]
  %s3 = sld [smem:[#allocation0]]
  $region49: #{tpu_custom_call.1} parent=0
    _
  %s5 = ssub.s32 1, %s3
  %s6 = scalar_select 0, %s5, %s3
  $region1: #{tpu_custom_call.1} parent=0
    #allocation2 [shape = 'u8[512]{0}', space=smem, size = 0x200, scoped, tag = 'input window, operand 0, single buffered']
    #allocation3 [shape = 's32[2]{0}', space=sflag, size = 0x8, scoped, tag = 'scoped memory for tpu_custom_call.1']
    #allocation4 [shape = 's32[2]{0}', space=sflag, size = 0x8, scoped, tag = 'scoped memory for tpu_custom_call.1']
    #allocation5 [shape = 's32[2]{0}', space=sflag, size = 0x8, scoped, tag = 'scoped memory for tpu_custom_call.1']
    #allocation6 [shape = 'u8[8192]{0}', space=vmem, size = 0x2000, scoped, tag = 'input window, operand 1']
    #allocation7 [shape = 'u8[1024]{0}', space=vmem, size = 0x400, scoped, tag = 'output window, operand 0']
    %7 = vsyncpa [#allocation5], 0
    %8 = vsyncpa [#allocation3], 0
    %s9 = scalar_lea.sflag [#allocation3], 1
    %10 = vsyncpa %s9, 0
    %11 = vsyncpa [#allocation4], 0
    %s12 = scalar_lea.sflag [#allocation4], 1
    %13 = vsyncpa %s12, 0
    loop: start=0, step=1, limit=6
    $region2: #{tpu_custom_call.1} parent=1 // loop_pre_header
      _
    $region3: #{tpu_custom_call.1} parent=1 // loop_header
      %s15 = sphi 0, %s19
      %p16 = scmp.ge.s32.totalorder %s15, 6
      %s23 = sphi 0, %s23
      %s25 = sphi 0, %s23
      %s26 = sphi 0, %s25
      %s40 = sphi 0, %s26
      %s46 = sphi 0, %s48
      %s49 = sphi 0, %s46
      %s50 = sphi 0, %s49
      %s66 = sphi 0, %s50
      %s72 = sphi 0, %s74
      %s75 = sphi 0, %s72
      %s76 = sphi 0, %s75
      %s92 = sphi 0, %s76
    $region4: #{tpu_custom_call.1} parent=1 // loop_header_branch
      %18 = sbr.rel (%p16) target = $region8
    $region5: #{tpu_custom_call.1} parent=1 // loop_body
      %s20 = ssub.s32 %s15, 1
      %s21 = ssub.s32 %s15, 2
      %s22 = sadd.s32 %s15, 1
      %s24 = sadd.s32 %s23, 1
      %p27 = scmp.eq.s32.totalorder %s15, 3
      %p28 = scmp.ne.s32.totalorder %s23, %s25
      %p29 = scmp.eq.s32.totalorder %s15, 0
      %p30 = por %p28, %p29
      %p31 = scmp.ne.s32.totalorder %s23, %s25
      %p32 = scmp.eq.s32.totalorder %s20, 3
      %p33 = por %p31, %p32
      %p34 = scmp.ne.s32.totalorder %s25, %s26
      %p35 = scmp.eq.s32.totalorder %s20, 0
      %p36 = por %p34, %p35
      %p37 = scmp.ne.s32.totalorder %s25, %s26
      %p38 = scmp.eq.s32.totalorder %s21, 3
      %p39 = por %p37, %p38
      %p41 = scmp.ne.s32.totalorder %s26, %s40
      %p42 = scmp.eq.s32.totalorder %s21, 0
      %p43 = por %p41, %p42
      %s44 = ssub.s32 %s15, %s22
      %p45 = scmp.eq.s32.totalorder %s44, 0
      %s47 = sadd.s32 %s46, 1
      %s48 = scalar_select %p45, %s46, %s47
      %p51 = pneg %p45
      %p52 = scmp.eq.s32.totalorder %s15, 3
      %p53 = por %p51, %p52
      %p54 = scmp.ne.s32.totalorder %s46, %s49
      %p55 = scmp.eq.s32.totalorder %s15, 0
      %p56 = por %p54, %p55
      %p57 = scmp.ne.s32.totalorder %s46, %s49
      %p58 = scmp.eq.s32.totalorder %s20, 3
      %p59 = por %p57, %p58
      %p60 = scmp.ne.s32.totalorder %s49, %s50
      %p61 = scmp.eq.s32.totalorder %s20, 0
      %p62 = por %p60, %p61
      %p63 = scmp.ne.s32.totalorder %s49, %s50
      %p64 = scmp.eq.s32.totalorder %s21, 3
      %p65 = por %p63, %p64
      %p67 = scmp.ne.s32.totalorder %s50, %s66
      %p68 = scmp.eq.s32.totalorder %s21, 0
      %p69 = por %p67, %p68
      %s70 = ssub.s32 %s15, %s22
      %p71 = scmp.eq.s32.totalorder %s70, 0
      %s73 = sadd.s32 %s72, 1
      %s74 = scalar_select %p71, %s72, %s73
      %p77 = pneg %p71
      %p78 = scmp.eq.s32.totalorder %s15, 3
      %p79 = por %p77, %p78
      %p80 = scmp.ne.s32.totalorder %s72, %s75
      %p81 = scmp.eq.s32.totalorder %s15, 0
      %p82 = por %p80, %p81
      %p83 = scmp.ne.s32.totalorder %s72, %s75
      %p84 = scmp.eq.s32.totalorder %s20, 3
      %p85 = por %p83, %p84
      %p86 = scmp.ne.s32.totalorder %s75, %s76
      %p87 = scmp.eq.s32.totalorder %s20, 0
      %p88 = por %p86, %p87
      %p89 = scmp.ne.s32.totalorder %s75, %s76
      %p90 = scmp.eq.s32.totalorder %s21, 3
      %p91 = por %p89, %p90
      %p93 = scmp.ne.s32.totalorder %s76, %s92
      %p94 = scmp.eq.s32.totalorder %s21, 0
      %p95 = por %p93, %p94
      %p96 = scmp.le.s32.totalorder 1, %s15
      %p97 = scmp.lt.s32.totalorder %s15, 5
      %p98 = pnand %p96, %p97
      %p99 = pneg %p98
      // Predicated region
      $region9: #{tpu_custom_call.1} parent=5 // pred_check
        _
      $region10: #{tpu_custom_call.1} parent=5 // pred_check_branch
        %101 = sbr.rel (%p98) target = $region12
      $region11: #{tpu_custom_call.1} parent=5 // pred_region
        %s102 = ssub.s32 %s15, 1
        // Predicated region
        $region13: #{tpu_custom_call.1} parent=11 // pred_check
          %p103 = pneg %p36
        $region14: #{tpu_custom_call.1} parent=11 // pred_check_branch
          %105 = sbr.rel (%p103) target = $region16
        $region15: #{tpu_custom_call.1} parent=11 // pred_region
          %s107 = ssub.s32 16, 16
          %108 = vsyncadd [#allocation5], %s107
          %111 = dma.hbm_to_smem %s0, 16, [#allocation2], [#allocation5]
        $region16: #{tpu_custom_call.1} parent=11 // pred_fallthru
          _
      $region12: #{tpu_custom_call.1} parent=5 // pred_fallthru
        _
      %p112 = scmp.lt.s32.totalorder %s15, 4
      // Predicated region
      $region17: #{tpu_custom_call.1} parent=5 // pred_check
        %p113 = pneg %p112
      $region18: #{tpu_custom_call.1} parent=5 // pred_check_branch
        %115 = sbr.rel (%p113) target = $region20
      $region19: #{tpu_custom_call.1} parent=5 // pred_region
        // Predicated region
        $region21: #{tpu_custom_call.1} parent=19 // pred_check
          %p116 = pneg %p56
        $region22: #{tpu_custom_call.1} parent=19 // pred_check_branch
          %118 = sbr.rel (%p116) target = $region24
        $region23: #{tpu_custom_call.1} parent=19 // pred_region
          %s119 = sand.u32 %s46, 1
          %s120 = scalar_lea.sflag [#allocation3], %s119
          %s121 = sand.u32 %s46, 1
          %s122 = smul.addr %s121, 8
          %s123 = scalar_lea.vmem [#allocation6], %s122
          %s125 = ssub.s32 128, 128
          %126 = vsyncadd %s120, %s125
          %s127 = smul.addr %s15, 128
          %s128 = scalar_lea.hbm %s1, %s127
          %s130 = sshll.u32 %s123, 4
          %s131 = int_to_ptr.vmem [resolvable:$true] %s130
          %133 = dma.hbm_to_vmem [thread:$0]  %s128, 128, %s131, %s120
        $region24: #{tpu_custom_call.1} parent=19 // pred_fallthru
          _
      $region20: #{tpu_custom_call.1} parent=5 // pred_fallthru
        _
      %p134 = scmp.le.s32.totalorder 1, %s15
      %p135 = scmp.lt.s32.totalorder %s15, 5
      %p136 = pnand %p134, %p135
      %p137 = pneg %p136
      // Predicated region
      $region25: #{tpu_custom_call.1} parent=5 // pred_check
        _
      $region26: #{tpu_custom_call.1} parent=5 // pred_check_branch
        %139 = sbr.rel (%p136) target = $region28
      $region27: #{tpu_custom_call.1} parent=5 // pred_region
        %s140 = ssub.s32 %s15, 1
        // Predicated region
        $region29: #{tpu_custom_call.1} parent=27 // pred_check
          %p141 = pneg %p36
        $region30: #{tpu_custom_call.1} parent=27 // pred_check_branch
          %143 = sbr.rel (%p141) target = $region32
        $region31: #{tpu_custom_call.1} parent=27 // pred_region
          %144 = dma.done [#allocation5], 16
        $region32: #{tpu_custom_call.1} parent=27 // pred_fallthru
          _
        %s145 = sand.u32 %s49, 1
        %s146 = scalar_lea.sflag [#allocation3], %s145
        %s147 = sand.u32 %s49, 1
        %s148 = smul.addr %s147, 8
        %s149 = scalar_lea.vmem [#allocation6], %s148
        // Predicated region
        $region33: #{tpu_custom_call.1} parent=27 // pred_check
          %p150 = pneg %p62
        $region34: #{tpu_custom_call.1} parent=27 // pred_check_branch
          %152 = sbr.rel (%p150) target = $region36
        $region35: #{tpu_custom_call.1} parent=27 // pred_region
          %153 = dma.done %s146, 128
        $region36: #{tpu_custom_call.1} parent=27 // pred_fallthru
          _
        %154 = sfence
        %p155 = pneg %p36
        %p156 = pneg %p33
        %s157 = sand.u32 %s49, 1
        %s158 = scalar_lea.sflag [#allocation3], %s157
        %s159 = sand.u32 %s49, 1
        %s160 = smul.addr %s159, 8
        %s161 = scalar_lea.vmem [#allocation6], %s160
        %p162 = pneg %p62
        %p163 = pneg %p59
        %p164 = pneg %p88
        %p165 = pneg %p85
        %s166 = sand.u32 %s75, 1
        %s167 = scalar_lea.sflag [#allocation4], %s166
        %s168 = sand.u32 %s75, 1
        %s169 = scalar_lea.vmem [#allocation7], %s168
        %v170 = vld [vmem:[%s149] sm:$0x7f]
        %s171 = sld [smem:[#allocation2]]
        %v172 = vstv %s171
        %v173 = vmul.f32 %v170, %v172
        %s174 = sld [smem:[#allocation2 + $0x1]]
        %v175 = vstv %s174
        %v176 = vmul.f32 %v170, %v175
        %v178 = vrot.slane %v176, 1
        %v180 = vadd.f32 %v173, %v178
        %s181 = sld [smem:[#allocation2 + $0x2]]
        %v182 = vstv %s181
        %v183 = vmul.f32 %v170, %v182
        %v185 = vrot.slane %v183, 2
        %v187 = vadd.f32 %v180, %v185
        %s188 = sld [smem:[#allocation2 + $0x3]]
        %v189 = vstv %s188
        %v190 = vmul.f32 %v170, %v189
        %v192 = vrot.slane %v190, 3
        %v194 = vadd.f32 %v187, %v192
        %s195 = sld [smem:[#allocation2 + $0x4]]
        %v196 = vstv %s195
        %v197 = vmul.f32 %v170, %v196
        %v199 = vrot.slane %v197, 4
        %v201 = vadd.f32 %v194, %v199
        %s202 = sld [smem:[#allocation2 + $0x5]]
        %v203 = vstv %s202
        %v204 = vmul.f32 %v170, %v203
        %v206 = vrot.slane %v204, 5
        %v208 = vadd.f32 %v201, %v206
        %s209 = sld [smem:[#allocation2 + $0x6]]
        %v210 = vstv %s209
        %v211 = vmul.f32 %v170, %v210
        %v213 = vrot.slane %v211, 6
        %v215 = vadd.f32 %v208, %v213
        %s216 = sld [smem:[#allocation2 + $0x7]]
        %v217 = vstv %s216
        %v218 = vadd.f32 %v215, %v217
        %v219 = vxor.u32 %v218, 2147483648
        %v220 = vmul.f32 %v219, 1.442695
        %v221 = vpow.pop %v220
        %v222 = vadd.f32 %v221, 1.0
        %v223 = vrcp.pop %v222
        %v224 = vmul.f32 1.0, %v223
        %225 = vst [vmem:[%s169] sm:$0x1] %v224
        %s226 = sand.u32 %s75, 1
        %s227 = scalar_lea.sflag [#allocation4], %s226
        %s228 = sand.u32 %s75, 1
        %s229 = scalar_lea.vmem [#allocation7], %s228
        // Predicated region
        $region37: #{tpu_custom_call.1} parent=27 // pred_check
          %p230 = pneg %p85
        $region38: #{tpu_custom_call.1} parent=27 // pred_check_branch
          %232 = sbr.rel (%p230) target = $region40
        $region39: #{tpu_custom_call.1} parent=27 // pred_region
          %s234 = ssub.s32 16, 16
          %235 = vsyncadd %s227, %s234
          %s236 = smul.addr %s20, 16
          %s237 = scalar_lea.hbm %s2, %s236
          %s239 = sshll.u32 %s229, 4
          %s240 = int_to_ptr.vmem [resolvable:$true] %s239
          %242 = dma.vmem_to_hbm [thread:$0]  %s240, 16, %s237, %s227
        $region40: #{tpu_custom_call.1} parent=27 // pred_fallthru
          _
      $region28: #{tpu_custom_call.1} parent=5 // pred_fallthru
        _
      %p243 = scmp.le.s32.totalorder 2, %s15
      // Predicated region
      $region41: #{tpu_custom_call.1} parent=5 // pred_check
        %p244 = pneg %p243
      $region42: #{tpu_custom_call.1} parent=5 // pred_check_branch
        %246 = sbr.rel (%p244) target = $region44
      $region43: #{tpu_custom_call.1} parent=5 // pred_region
        %s247 = ssub.s32 %s15, 2
        // Predicated region
        $region45: #{tpu_custom_call.1} parent=43 // pred_check
          %p248 = pneg %p91
        $region46: #{tpu_custom_call.1} parent=43 // pred_check_branch
          %250 = sbr.rel (%p248) target = $region48
        $region47: #{tpu_custom_call.1} parent=43 // pred_region
          %s251 = sand.u32 %s76, 1
          %s252 = scalar_lea.sflag [#allocation4], %s251
          %s253 = sand.u32 %s76, 1
          %s254 = scalar_lea.vmem [#allocation7], %s253
          %255 = dma.done %s252, 16
        $region48: #{tpu_custom_call.1} parent=43 // pred_fallthru
          _
      $region44: #{tpu_custom_call.1} parent=5 // pred_fallthru
        _
    $region6: #{tpu_custom_call.1} parent=1 // loop_footer
      %s19 = sadd.s32 1, %s15
    $region7: #{tpu_custom_call.1} parent=1 // loop_footer_branch
      %14 = sbr.rel target = $region3
    $region8: #{tpu_custom_call.1} parent=1 // loop_exit
      _
    %256 = vsyncpa [#allocation3], 1
    %s257 = scalar_lea.sflag [#allocation3], 1
    %258 = vsyncpa %s257, 1
    %259 = vsyncpa [#allocation4], 1
    %s260 = scalar_lea.sflag [#allocation4], 1
    %261 = vsyncpa %s260, 1
    %262 = vsyncpa [#allocation5], 1
    %s263 = scalar_lea.sflag [#allocation5], 1
    %264 = vsyncpa %s263, 1

</llo_original>
